<compile_context>
chip_gen: v5e
topology: v5e:2x2
jax: 0.10.0
libtpu: 0.0.40
codegen_flags: <defaults>
</compile_context>

<pallas_src>
import functools

import jax
import jax.numpy as jnp
from jax.experimental import pallas as pl
from jax.experimental.pallas import tpu as pltpu


def _ensemble_mlp_kernel(x_ref, w1_ref, b1_ref, w2_ref, b2_ref, w3_ref, b3_ref,
                         o_ref, *, n_obj, h1_size, negative_slope, matmul_dtype):
    # x tile: (block_m, D), cast once to the MXU dtype.
    x = x_ref[...].astype(matmul_dtype)

    # Layer 1 fused across all objectives: one (block_m, D) x (D, n_obj*H1) MXU pass
    # (f32 accumulation, f32 bias/LeakyReLU epilogue) instead of n_obj narrow passes.
    h1 = jnp.dot(x, w1_ref[...], preferred_element_type=jnp.float32) + b1_ref[...]
    h1 = jnp.maximum(h1, negative_slope * h1)
    h1 = h1.astype(matmul_dtype)                       # single cast for layer-2 operands

    cols = []
    for o in range(n_obj):                             # static unroll (n_obj small)
        h1_o = h1[:, o * h1_size:(o + 1) * h1_size]    # aligned static lane slice
        # Layer 2: Linear + LeakyReLU (MXU, f32 accumulate, f32 epilogue).
        h2 = jnp.dot(h1_o, w2_ref[o], preferred_element_type=jnp.float32) + b2_ref[o]
        h2 = jnp.maximum(h2, negative_slope * h2)
        # Output head (H2 -> 1): VPU broadcast-multiply + lane reduce (an MXU
        # (block_m,H2)x(H2,1) matmul would waste 127/128 output lanes).
        cols.append(jnp.sum(h2 * w3_ref[o], axis=-1, keepdims=True) + b3_ref[o])

    # Assemble (block_m, n_obj), then ONE small XLU transpose -> lane-dense
    # (n_obj, block_m) output tile (no masked narrow stores, no where/iota select).
    out = jnp.concatenate(cols, axis=-1)               # (block_m, n_obj)
    o_ref[...] = out.T.astype(o_ref.dtype)             # (n_obj, block_m)


def prepare_params(params, *, matmul_dtype=jnp.bfloat16):
    """One-time parameter prep (call at load time, NOT per forward call):
    fuse layer-1 weights across objectives and cast matmul operands to bf16."""
    w1, b1, w2, b2, w3, b3 = (params["w1"], params["b1"], params["w2"],
                              params["b2"], params["w3"], params["b3"])
    n_obj, D, H1 = w1.shape
    # (n_obj, D, H1) -> (D, n_obj*H1): layer-1 weights concatenated along N so one
    # matmul serves every objective.
    w1_all = jnp.transpose(w1, (1, 0, 2)).reshape(D, n_obj * H1).astype(matmul_dtype)
    b1_all = b1.reshape(1, n_obj * H1)                 # f32; epilogue math stays f32
    return {
        "w1_all": w1_all,
        "b1_all": b1_all,
        "w2": w2.astype(matmul_dtype),
        "b2": b2,                                      # (n_obj, 1, H2) f32
        "w3": w3,                                      # (n_obj, 1, H2) f32 head rows
        "b3": b3,                                      # (n_obj,) f32 -> SMEM
    }


def _vmem_estimate_bytes(block_m, D, H1, H2, n_obj, x_itemsize, w_itemsize):
    """Rough VMEM working set: single-buffered weights + double-buffered I/O tiles
    + in-flight f32/bf16 activations."""
    weights = (D * n_obj * H1 * w_itemsize            # w1_all (bf16)
               + n_obj * H1 * 4                        # b1_all (f32)
               + n_obj * H1 * H2 * w_itemsize          # w2 (bf16)
               + 2 * n_obj * H2 * 4)                   # b2 + w3 (f32)
    io = 2 * block_m * D * x_itemsize + 2 * n_obj * block_m * 4
    interm = (block_m * (n_obj * H1 * (4 + w_itemsize) + H2 * (4 + w_itemsize))
              + 4 * n_obj * block_m * 4)
    return weights + io + interm


def multiple_models_forward(x, prepared, *, negative_slope=0.01,
                            matmul_dtype=jnp.bfloat16, block_m=None):
    """Pallas forward for MultipleModels ('vallina' SingleModel ensemble).

    x:        (B, n_dim) float32
    prepared: output of prepare_params (fused / pre-cast weights)
    Returns (B, n_obj), matching torch.cat([model_o(x) for o], dim=1).
    """
    w1_all, b1_all = prepared["w1_all"], prepared["b1_all"]
    w2, b2, w3, b3 = prepared["w2"], prepared["b2"], prepared["w3"], prepared["b3"]
    D, NH1 = w1_all.shape
    n_obj, H1, H2 = w2.shape
    B = x.shape[0]

    # VMEM capacity (64 MiB on v7x, 128 MiB on v5e/v6e); conservative fallback.
    try:
        vmem_cap = pltpu.get_tpu_info().vmem_capacity_bytes
    except Exception:
        vmem_cap = 64 * 1024 * 1024

    x_itemsize = jnp.dtype(x.dtype).itemsize
    w_itemsize = jnp.dtype(matmul_dtype).itemsize

    if block_m is None:
        # Largest MXU-friendly batch tile whose working set fits comfortably in VMEM
        # (big tiles amortize the ~0.35us/step grid overhead and MXU drains).
        block_m = 128
        for cand in (1024, 512, 256, 128):
            if (_vmem_estimate_bytes(cand, D, H1, H2, n_obj, x_itemsize, w_itemsize)
                    <= 0.7 * vmem_cap):
                block_m = cand
                break

    # Keep >=2 batch tiles when the batch allows so both TensorCores get work on
    # dual-core parts (v7x); harmless on single-TC v5e/v6e.
    if B > 256:
        half_up = (((B + 1) // 2 + 127) // 128) * 128
        block_m = min(block_m, max(128, half_up))

    if B > block_m:
        bm = block_m                       # multiple of 128 -> lane/sublane aligned
        num_tiles = pl.cdiv(B, bm)         # ragged last tile: Pallas partial blocks
    else:
        bm = B                             # single block == full array, no padding
        num_tiles = 1

    est = _vmem_estimate_bytes(bm, D, H1, H2, n_obj, x_itemsize, w_itemsize)
    vmem_limit = int(min(0.9 * vmem_cap, max(32 * 1024 * 1024, est + (8 << 20))))

    kernel = functools.partial(_ensemble_mlp_kernel, n_obj=n_obj, h1_size=H1,
                               negative_slope=negative_slope,
                               matmul_dtype=matmul_dtype)

    resident = pl.Buffered(1)              # grid-invariant weights: single-buffered

    out_t = pl.pallas_call(
        kernel,
        out_shape=jax.ShapeDtypeStruct((n_obj, B), x.dtype),
        grid_spec=pltpu.PrefetchScalarGridSpec(
            num_scalar_prefetch=0,
            grid=(num_tiles,),
            in_specs=[
                pl.BlockSpec((bm, D), lambda i: (i, 0)),                 # x tile (streamed)
                pl.BlockSpec((D, NH1), lambda i: (0, 0),
                             pipeline_mode=resident),                    # fused w1 (bf16)
                pl.BlockSpec((1, NH1), lambda i: (0, 0),
                             pipeline_mode=resident),                    # fused b1 (f32)
                pl.BlockSpec((n_obj, H1, H2), lambda i: (0, 0, 0),
                             pipeline_mode=resident),                    # w2 (bf16)
                pl.BlockSpec((n_obj, 1, H2), lambda i: (0, 0, 0),
                             pipeline_mode=resident),                    # b2 (f32)
                pl.BlockSpec((n_obj, 1, H2), lambda i: (0, 0, 0),
                             pipeline_mode=resident),                    # w3 head rows (f32)
                pl.BlockSpec(memory_space=pltpu.MemorySpace.SMEM),       # b3 scalars
            ],
            # Lane-dense output: (n_obj, B) with last-dim blocks of bm (>=128 when tiled).
            out_specs=pl.BlockSpec((n_obj, bm), lambda i: (0, i)),
        ),
        compiler_params=pltpu.CompilerParams(
            dimension_semantics=("parallel",),       # batch tiles shard across cores
            vmem_limit_bytes=vmem_limit),
    )(x, w1_all, b1_all, w2, b2, w3, b3)

    # Tiny (n_obj, B) -> (B, n_obj) transpose in the wrapper (negligible vs x read).
    return out_t.T


def init_params(key, n_obj, input_size, hidden_sizes):
    """Deterministic synthetic init (shapes match the stacked nn.Linear layers,
    stored transposed so the kernel computes x @ W + b)."""
    D = input_size
    H1, H2 = hidden_sizes
    k = jax.random.split(key, 6)
    s1 = 1.0 / jnp.sqrt(D)
    s2 = 1.0 / jnp.sqrt(H1)
    s3 = 1.0 / jnp.sqrt(H2)
    return {
        "w1": jax.random.uniform(k[0], (n_obj, D, H1), jnp.float32, -s1, s1),
        "b1": jax.random.uniform(k[1], (n_obj, 1, H1), jnp.float32, -s1, s1),
        "w2": jax.random.uniform(k[2], (n_obj, H1, H2), jnp.float32, -s2, s2),
        "b2": jax.random.uniform(k[3], (n_obj, 1, H2), jnp.float32, -s2, s2),
        "w3": jax.random.uniform(k[4], (n_obj, 1, H2), jnp.float32, -s3, s3),
        "b3": jax.random.uniform(k[5], (n_obj,), jnp.float32, -s3, s3),
    }


def _reference(x, params, *, negative_slope=0.01, matmul_dtype=jnp.bfloat16):
    """Pure-JAX reference mirroring the kernel's bf16-operand / f32-accumulate matmuls."""
    w1, b1, w2, b2, w3, b3 = (params["w1"], params["b1"], params["w2"],
                              params["b2"], params["w3"], params["b3"])
    cols = []
    for o in range(w1.shape[0]):
        h1 = jnp.dot(x.astype(matmul_dtype), w1[o].astype(matmul_dtype),
                     preferred_element_type=jnp.float32) + b1[o]
        h1 = jnp.maximum(h1, negative_slope * h1)
        h2 = jnp.dot(h1.astype(matmul_dtype), w2[o].astype(matmul_dtype),
                     preferred_element_type=jnp.float32) + b2[o]
        h2 = jnp.maximum(h2, negative_slope * h2)
        cols.append(jnp.sum(h2 * w3[o], axis=-1, keepdims=True) + b3[o])
    return jnp.concatenate(cols, axis=-1)


if __name__ == "__main__":
    key = jax.random.PRNGKey(0)
    kx, kp = jax.random.split(key)

    batch = 8
    n_dim = 32
    n_obj = 2
    hidden_sizes = (128, 128)   # small stand-in for the real hidden sizes

    x = jax.random.normal(kx, (batch, n_dim), dtype=jnp.float32)
    params = init_params(kp, n_obj, n_dim, hidden_sizes)

    # One-time parameter prep (fusion + bf16 cast) outside the forward path.
    prepared = prepare_params(params)

    out = multiple_models_forward(x, prepared)
    out = jax.block_until_ready(out)

    ref = _reference(x, params)
    assert out.shape == (batch, n_obj), out.shape
    max_err = jnp.max(jnp.abs(out - ref))
    assert jnp.allclose(out, ref, atol=5e-3, rtol=5e-3), f"max abs err {max_err}"

    print("KERNEL_OK")
</pallas_src>

<mosaic_0001>
module attributes {stable_mosaic.version = 11 : i64} {
  func.func @_ensemble_mlp_kernel(%arg0: i32, %arg1: memref<8x32xf32, #tpu.memory_space<vmem>>, %arg2: memref<32x256xbf16, #tpu.memory_space<vmem>>, %arg3: memref<1x256xf32, #tpu.memory_space<vmem>>, %arg4: memref<2x128x128xbf16, #tpu.memory_space<vmem>>, %arg5: memref<2x1x128xf32, #tpu.memory_space<vmem>>, %arg6: memref<2x1x128xf32, #tpu.memory_space<vmem>>, %arg7: memref<2xf32, #tpu.memory_space<smem>>, %arg8: memref<2x8xf32, #tpu.memory_space<vmem>>) attributes {dimension_semantics = [#tpu.dimension_semantics<parallel>], iteration_bounds = array<i64: 1>, scalar_prefetch = 0 : i64, scratch_operands = 0 : i64, tpu.core_type = #tpu.core_type<tc>, window_params = [{transform_indices = @transform_0, window_bounds = array<i64: 8, 32>}, {pipeline_mode = #tpu.pipeline_mode<synchronous>, transform_indices = @transform_1, window_bounds = array<i64: 32, 256>}, {pipeline_mode = #tpu.pipeline_mode<synchronous>, transform_indices = @transform_2, window_bounds = array<i64: 1, 256>}, {pipeline_mode = #tpu.pipeline_mode<synchronous>, transform_indices = @transform_3, window_bounds = array<i64: 2, 128, 128>}, {pipeline_mode = #tpu.pipeline_mode<synchronous>, transform_indices = @transform_4, window_bounds = array<i64: 2, 1, 128>}, {pipeline_mode = #tpu.pipeline_mode<synchronous>, transform_indices = @transform_5, window_bounds = array<i64: 2, 1, 128>}, {transform_indices = @transform_6, window_bounds = array<i64: 2>}, {transform_indices = @transform_7, window_bounds = array<i64: 2, 8>}]} {
    %c0 = arith.constant 0 : index
    %c0_0 = arith.constant 0 : index
    %0 = vector.load %arg1[%c0, %c0_0] : memref<8x32xf32, #tpu.memory_space<vmem>>, vector<8x32xf32>
    %1 = arith.truncf %0 : vector<8x32xf32> to vector<8x32xbf16>
    %c0_1 = arith.constant 0 : index
    %c0_2 = arith.constant 0 : index
    %2 = vector.load %arg2[%c0_1, %c0_2] : memref<32x256xbf16, #tpu.memory_space<vmem>>, vector<32x256xbf16>
    %cst = arith.constant dense<0.000000e+00> : vector<8x256xf32>
    %3 = tpu.matmul %1, %2, %cst {dimension_numbers = #tpu.dot_dimension_numbers<[1], [0], [0], [1], [0, 0, 1, 1], [], []>} : vector<8x32xbf16>, vector<32x256xbf16>, vector<8x256xf32> -> vector<8x256xf32>
    %c0_3 = arith.constant 0 : index
    %c0_4 = arith.constant 0 : index
    %4 = vector.load %arg3[%c0_3, %c0_4] : memref<1x256xf32, #tpu.memory_space<vmem>>, vector<1x256xf32>
    %5 = vector.broadcast %4 : vector<1x256xf32> to vector<8x256xf32>
    %6 = arith.addf %3, %5 : vector<8x256xf32>
    %cst_5 = arith.constant 0.00999999977 : f32
    %7 = vector.broadcast %cst_5 : f32 to vector<8x256xf32>
    %8 = arith.mulf %7, %6 : vector<8x256xf32>
    %9 = arith.maximumf %6, %8 : vector<8x256xf32>
    %10 = arith.truncf %9 : vector<8x256xf32> to vector<8x256xbf16>
    %11 = vector.extract_strided_slice %10 {offsets = [0, 0], sizes = [8, 128], strides = [1, 1]} : vector<8x256xbf16> to vector<8x128xbf16>
    %c0_6 = arith.constant 0 : index
    %c0_7 = arith.constant 0 : index
    %c0_8 = arith.constant 0 : index
    %12 = vector.load %arg4[%c0_6, %c0_7, %c0_8] : memref<2x128x128xbf16, #tpu.memory_space<vmem>>, vector<1x128x128xbf16>
    %13 = vector.shape_cast %12 : vector<1x128x128xbf16> to vector<128x128xbf16>
    %cst_9 = arith.constant dense<0.000000e+00> : vector<8x128xf32>
    %14 = tpu.matmul %11, %13, %cst_9 {dimension_numbers = #tpu.dot_dimension_numbers<[1], [0], [0], [1], [0, 0, 1, 1], [], []>} : vector<8x128xbf16>, vector<128x128xbf16>, vector<8x128xf32> -> vector<8x128xf32>
    %c0_10 = arith.constant 0 : index
    %c0_11 = arith.constant 0 : index
    %c0_12 = arith.constant 0 : index
    %15 = vector.load %arg5[%c0_10, %c0_11, %c0_12] : memref<2x1x128xf32, #tpu.memory_space<vmem>>, vector<1x1x128xf32>
    %16 = vector.shape_cast %15 : vector<1x1x128xf32> to vector<1x128xf32>
    %17 = vector.broadcast %16 : vector<1x128xf32> to vector<8x128xf32>
    %18 = arith.addf %14, %17 : vector<8x128xf32>
    %cst_13 = arith.constant 0.00999999977 : f32
    %19 = vector.broadcast %cst_13 : f32 to vector<8x128xf32>
    %20 = arith.mulf %19, %18 : vector<8x128xf32>
    %21 = arith.maximumf %18, %20 : vector<8x128xf32>
    %c0_14 = arith.constant 0 : index
    %c0_15 = arith.constant 0 : index
    %c0_16 = arith.constant 0 : index
    %22 = vector.load %arg6[%c0_14, %c0_15, %c0_16] : memref<2x1x128xf32, #tpu.memory_space<vmem>>, vector<1x1x128xf32>
    %23 = vector.shape_cast %22 : vector<1x1x128xf32> to vector<1x128xf32>
    %24 = vector.broadcast %23 : vector<1x128xf32> to vector<8x128xf32>
    %25 = arith.mulf %21, %24 : vector<8x128xf32>
    %cst_17 = arith.constant dense<0.000000e+00> : vector<8xf32>
    %26 = vector.multi_reduction <add>, %25, %cst_17 [1] : vector<8x128xf32> to vector<8xf32>
    %27 = vector.shape_cast %26 : vector<8xf32> to vector<8x1xf32>
    %c0_18 = arith.constant 0 : index
    %28 = memref.load %arg7[%c0_18] : memref<2xf32, #tpu.memory_space<smem>>
    %29 = vector.broadcast %28 : f32 to vector<8x1xf32>
    %30 = arith.addf %27, %29 : vector<8x1xf32>
    %31 = vector.extract_strided_slice %10 {offsets = [0, 128], sizes = [8, 128], strides = [1, 1]} : vector<8x256xbf16> to vector<8x128xbf16>
    %c1 = arith.constant 1 : index
    %c0_19 = arith.constant 0 : index
    %c0_20 = arith.constant 0 : index
    %32 = vector.load %arg4[%c1, %c0_19, %c0_20] : memref<2x128x128xbf16, #tpu.memory_space<vmem>>, vector<1x128x128xbf16>
    %33 = vector.shape_cast %32 : vector<1x128x128xbf16> to vector<128x128xbf16>
    %cst_21 = arith.constant dense<0.000000e+00> : vector<8x128xf32>
    %34 = tpu.matmul %31, %33, %cst_21 {dimension_numbers = #tpu.dot_dimension_numbers<[1], [0], [0], [1], [0, 0, 1, 1], [], []>} : vector<8x128xbf16>, vector<128x128xbf16>, vector<8x128xf32> -> vector<8x128xf32>
    %c1_22 = arith.constant 1 : index
    %c0_23 = arith.constant 0 : index
    %c0_24 = arith.constant 0 : index
    %35 = vector.load %arg5[%c1_22, %c0_23, %c0_24] : memref<2x1x128xf32, #tpu.memory_space<vmem>>, vector<1x1x128xf32>
    %36 = vector.shape_cast %35 : vector<1x1x128xf32> to vector<1x128xf32>
    %37 = vector.broadcast %36 : vector<1x128xf32> to vector<8x128xf32>
    %38 = arith.addf %34, %37 : vector<8x128xf32>
    %cst_25 = arith.constant 0.00999999977 : f32
    %39 = vector.broadcast %cst_25 : f32 to vector<8x128xf32>
    %40 = arith.mulf %39, %38 : vector<8x128xf32>
    %41 = arith.maximumf %38, %40 : vector<8x128xf32>
    %c1_26 = arith.constant 1 : index
    %c0_27 = arith.constant 0 : index
    %c0_28 = arith.constant 0 : index
    %42 = vector.load %arg6[%c1_26, %c0_27, %c0_28] : memref<2x1x128xf32, #tpu.memory_space<vmem>>, vector<1x1x128xf32>
    %43 = vector.shape_cast %42 : vector<1x1x128xf32> to vector<1x128xf32>
    %44 = vector.broadcast %43 : vector<1x128xf32> to vector<8x128xf32>
    %45 = arith.mulf %41, %44 : vector<8x128xf32>
    %cst_29 = arith.constant dense<0.000000e+00> : vector<8xf32>
    %46 = vector.multi_reduction <add>, %45, %cst_29 [1] : vector<8x128xf32> to vector<8xf32>
    %47 = vector.shape_cast %46 : vector<8xf32> to vector<8x1xf32>
    %c1_30 = arith.constant 1 : index
    %48 = memref.load %arg7[%c1_30] : memref<2xf32, #tpu.memory_space<smem>>
    %49 = vector.broadcast %48 : f32 to vector<8x1xf32>
    %50 = arith.addf %47, %49 : vector<8x1xf32>
    %51 = tpu.concatenate %30, %50 in 1 : vector<8x1xf32>, vector<8x1xf32> -> vector<8x2xf32>
    %52 = tpu.transpose %51, [1, 0] : vector<8x2xf32> -> vector<2x8xf32>
    %c0_31 = arith.constant 0 : index
    %c0_32 = arith.constant 0 : index
    %53 = vector.load %arg8[%c0_31, %c0_32] : memref<2x8xf32, #tpu.memory_space<vmem>>, vector<2x8xf32>
    tpu.vector_store %arg8[%c0_31, %c0_32], %52 {strides = array<i32>} : memref<2x8xf32, #tpu.memory_space<vmem>>, vector<2x8xf32>,
    return
  }
  func.func @transform_0(%arg0: i32) -> (i32, i32) {
    %c0_i32 = arith.constant 0 : i32
    %c0_i32_0 = arith.constant 0 : i32
    return %arg0, %c0_i32 : i32, i32
  }
  func.func @transform_1(%arg0: i32) -> (i32, i32) {
    %c0_i32 = arith.constant 0 : i32
    %c0_i32_0 = arith.constant 0 : i32
    %c0_i32_1 = arith.constant 0 : i32
    return %c0_i32, %c0_i32_0 : i32, i32
  }
  func.func @transform_2(%arg0: i32) -> (i32, i32) {
    %c0_i32 = arith.constant 0 : i32
    %c0_i32_0 = arith.constant 0 : i32
    %c0_i32_1 = arith.constant 0 : i32
    return %c0_i32, %c0_i32_0 : i32, i32
  }
  func.func @transform_3(%arg0: i32) -> (i32, i32, i32) {
    %c0_i32 = arith.constant 0 : i32
    %c0_i32_0 = arith.constant 0 : i32
    %c0_i32_1 = arith.constant 0 : i32
    %c0_i32_2 = arith.constant 0 : i32
    return %c0_i32, %c0_i32_0, %c0_i32_1 : i32, i32, i32
  }
  func.func @transform_4(%arg0: i32) -> (i32, i32, i32) {
    %c0_i32 = arith.constant 0 : i32
    %c0_i32_0 = arith.constant 0 : i32
    %c0_i32_1 = arith.constant 0 : i32
    %c0_i32_2 = arith.constant 0 : i32
    return %c0_i32, %c0_i32_0, %c0_i32_1 : i32, i32, i32
  }
  func.func @transform_5(%arg0: i32) -> (i32, i32, i32) {
    %c0_i32 = arith.constant 0 : i32
    %c0_i32_0 = arith.constant 0 : i32
    %c0_i32_1 = arith.constant 0 : i32
    %c0_i32_2 = arith.constant 0 : i32
    return %c0_i32, %c0_i32_0, %c0_i32_1 : i32, i32, i32
  }
  func.func @transform_6(%arg0: i32) -> i32 {
    %c0_i32 = arith.constant 0 : i32
    %c0_i32_0 = arith.constant 0 : i32
    return %c0_i32 : i32
  }
  func.func @transform_7(%arg0: i32) -> (i32, i32) {
    %c0_i32 = arith.constant 0 : i32
    %c0_i32_0 = arith.constant 0 : i32
    return %c0_i32, %arg0 : i32, i32
  }
}

</mosaic_0001>

<llo_original>
// kernel: tpu_custom_call.1
$region0: #{tpu_custom_call.1}
  #allocation0 [shape = 'u32[]', space=smem, size = 0x4, offset = 0x4, fixed_abs, tag = 'smem constant byte address 0x4 - core index']
  #allocation1 [shape = 'u32[72,128]{1,0:T(1,128)}', space=vmem, size = 0x9000, scoped, tag = 'internal scratch']
  %s0 = inlined_call_operand.hbm [shape: f32[8,32], index: 0, kind: input, shape index: {}]
  %s1 = inlined_call_operand.hbm [shape: bf16[32,256], index: 1, kind: input, shape index: {}]
  %s2 = inlined_call_operand.hbm [shape: f32[1,256], index: 2, kind: input, shape index: {}]
  %s3 = inlined_call_operand.hbm [shape: bf16[2,128,128], index: 3, kind: input, shape index: {}]
  %s4 = inlined_call_operand.vmem [shape: f32[2,1,128], index: 4, kind: input, shape index: {}]
  %s5 = inlined_call_operand.vmem [shape: f32[2,1,128], index: 5, kind: input, shape index: {}]
  %s6 = inlined_call_operand.vmem [shape: f32[2], index: 6, kind: input, shape index: {}]
  %s7 = inlined_call_operand.hbm [shape: f32[2,8], index: 7, kind: output, shape index: {}]
  %s8 = sld [smem:[#allocation0]]
  $region58: #{tpu_custom_call.1} parent=0
    _
  %s10 = ssub.s32 1, %s8
  %s11 = scalar_select 0, %s10, %s8
  $region1: #{tpu_custom_call.1} parent=0
    #allocation2 [shape = 'u8[4096]{0}', space=vmem, size = 0x1000, scoped, tag = 'input window, operand 0, single buffered']
    #allocation3 [shape = 's32[1]{0}', space=sflag, size = 0x4, scoped, tag = 'scoped memory for tpu_custom_call.1']
    #allocation4 [shape = 's32[1]{0}', space=sflag, size = 0x4, scoped, tag = 'scoped memory for tpu_custom_call.1']
    #allocation5 [shape = 's32[1]{0}', space=sflag, size = 0x4, scoped, tag = 'scoped memory for tpu_custom_call.1']
    #allocation6 [shape = 'u8[16384]{0}', space=vmem, size = 0x4000, scoped, tag = 'input window, operand 1, single buffered']
    #allocation7 [shape = 's32[1]{0}', space=sflag, size = 0x4, scoped, tag = 'scoped memory for tpu_custom_call.1']
    #allocation8 [shape = 'u8[1024]{0}', space=vmem, size = 0x400, scoped, tag = 'input window, operand 2, single buffered']
    #allocation9 [shape = 'u8[65536]{0}', space=vmem, size = 0x10000, scoped, tag = 'input window, operand 3, single buffered']
    #allocation10 [shape = 's32[1]{0}', space=sflag, size = 0x4, scoped, tag = 'scoped memory for tpu_custom_call.1']
    #allocation11 [shape = 'u8[512]{0}', space=smem, size = 0x200, scoped, tag = 'input window, operand 6, single buffered']
    #allocation12 [shape = 'u8[1024]{0}', space=vmem, size = 0x400, scoped, tag = 'output window, operand 0, single buffered']
    %12 = vsyncpa [#allocation3], 0
    %13 = vsyncpa [#allocation7], 0
    %14 = vsyncpa [#allocation10], 0
    %15 = vsyncpa [#allocation5], 0
    %16 = vsyncpa [#allocation4], 0
    // Predicated region
    $region2: #{tpu_custom_call.1} parent=1 // pred_check
      _
    $region3: #{tpu_custom_call.1} parent=1 // pred_check_branch
      %18 = sbr.rel (0) target = $region5
    $region4: #{tpu_custom_call.1} parent=1 // pred_region
      %20 = vsyncadd [#allocation3], 0
      %s22 = sshll.u32 %s0, 4
      %s23 = int_to_ptr.hbm [resolvable:$true] %s22
      %s24 = sshll.u32 [#allocation2], 4
      %s25 = int_to_ptr.vmem [resolvable:$true] %s24
      %27 = dma.hbm_to_vmem [thread:$0]  %s23, 128, %s25, [#allocation3]
    $region5: #{tpu_custom_call.1} parent=1 // pred_fallthru
      _
    // Predicated region
    $region6: #{tpu_custom_call.1} parent=1 // pred_check
      _
    $region7: #{tpu_custom_call.1} parent=1 // pred_check_branch
      %29 = sbr.rel (0) target = $region9
    $region8: #{tpu_custom_call.1} parent=1 // pred_region
      %31 = vsyncadd [#allocation7], 0
      %s32 = sshll.u32 %s1, 4
      %s33 = int_to_ptr.hbm [resolvable:$true] %s32
      %s34 = sshll.u32 [#allocation6], 4
      %s35 = int_to_ptr.vmem [resolvable:$true] %s34
      %40 = dma.hbm_to_vmem [thread:$0]  %s33, 512, %s35, [#allocation7], 128, 128, 8
    $region9: #{tpu_custom_call.1} parent=1 // pred_fallthru
      _
    // Predicated region
    $region10: #{tpu_custom_call.1} parent=1 // pred_check
      _
    $region11: #{tpu_custom_call.1} parent=1 // pred_check_branch
      %42 = sbr.rel (0) target = $region13
    $region12: #{tpu_custom_call.1} parent=1 // pred_region
      %44 = vsyncadd [#allocation7], 0
      %s46 = sshll.u32 %s2, 4
      %s47 = int_to_ptr.hbm [resolvable:$true] %s46
      %s48 = sshll.u32 [#allocation8], 4
      %s49 = int_to_ptr.vmem [resolvable:$true] %s48
      %51 = dma.hbm_to_vmem [thread:$0]  %s47, 32, %s49, [#allocation7]
    $region13: #{tpu_custom_call.1} parent=1 // pred_fallthru
      _
    // Predicated region
    $region14: #{tpu_custom_call.1} parent=1 // pred_check
      _
    $region15: #{tpu_custom_call.1} parent=1 // pred_check_branch
      %53 = sbr.rel (0) target = $region17
    $region16: #{tpu_custom_call.1} parent=1 // pred_region
      %55 = vsyncadd [#allocation10], 0
      %s56 = sshll.u32 %s3, 4
      %s57 = int_to_ptr.hbm [resolvable:$true] %s56
      %s58 = sshll.u32 [#allocation9], 4
      %s59 = int_to_ptr.vmem [resolvable:$true] %s58
      %64 = dma.hbm_to_vmem [thread:$0]  %s57, 2048, %s59, [#allocation10], 64, 64, 4
    $region17: #{tpu_custom_call.1} parent=1 // pred_fallthru
      _
    // Predicated region
    $region18: #{tpu_custom_call.1} parent=1 // pred_check
      _
    $region19: #{tpu_custom_call.1} parent=1 // pred_check_branch
      %66 = sbr.rel (0) target = $region21
    $region20: #{tpu_custom_call.1} parent=1 // pred_region
      _
    $region21: #{tpu_custom_call.1} parent=1 // pred_fallthru
      _
    // Predicated region
    $region22: #{tpu_custom_call.1} parent=1 // pred_check
      _
    $region23: #{tpu_custom_call.1} parent=1 // pred_check_branch
      %68 = sbr.rel (0) target = $region25
    $region24: #{tpu_custom_call.1} parent=1 // pred_region
      _
    $region25: #{tpu_custom_call.1} parent=1 // pred_fallthru
      _
    // Predicated region
    $region26: #{tpu_custom_call.1} parent=1 // pred_check
      _
    $region27: #{tpu_custom_call.1} parent=1 // pred_check_branch
      %70 = sbr.rel (0) target = $region29
    $region28: #{tpu_custom_call.1} parent=1 // pred_region
      %72 = vsyncadd [#allocation5], 0
      %s74 = sshll.u32 %s6, 4
      %s75 = int_to_ptr.vmem [resolvable:$true] %s74
      %77 = dma.vmem_to_smem %s75, 16, [#allocation11], [#allocation5]
    $region29: #{tpu_custom_call.1} parent=1 // pred_fallthru
      _
    // Predicated region
    $region30: #{tpu_custom_call.1} parent=1 // pred_check
      _
    $region31: #{tpu_custom_call.1} parent=1 // pred_check_branch
      %79 = sbr.rel (0) target = $region33
    $region32: #{tpu_custom_call.1} parent=1 // pred_region
      %81 = dma.done [#allocation3], 128
    $region33: #{tpu_custom_call.1} parent=1 // pred_fallthru
      _
    // Predicated region
    $region34: #{tpu_custom_call.1} parent=1 // pred_check
      _
    $region35: #{tpu_custom_call.1} parent=1 // pred_check_branch
      %83 = sbr.rel (0) target = $region37
    $region36: #{tpu_custom_call.1} parent=1 // pred_region
      %85 = dma.done [#allocation7], 512
    $region37: #{tpu_custom_call.1} parent=1 // pred_fallthru
      _
    // Predicated region
    $region38: #{tpu_custom_call.1} parent=1 // pred_check
      _
    $region39: #{tpu_custom_call.1} parent=1 // pred_check_branch
      %87 = sbr.rel (0) target = $region41
    $region40: #{tpu_custom_call.1} parent=1 // pred_region
      %89 = dma.done [#allocation7], 32
    $region41: #{tpu_custom_call.1} parent=1 // pred_fallthru
      _
    // Predicated region
    $region42: #{tpu_custom_call.1} parent=1 // pred_check
      _
    $region43: #{tpu_custom_call.1} parent=1 // pred_check_branch
      %91 = sbr.rel (0) target = $region45
    $region44: #{tpu_custom_call.1} parent=1 // pred_region
      %93 = dma.done [#allocation10], 2048
    $region45: #{tpu_custom_call.1} parent=1 // pred_fallthru
      _
    // Predicated region
    $region46: #{tpu_custom_call.1} parent=1 // pred_check
      _
    $region47: #{tpu_custom_call.1} parent=1 // pred_check_branch
      %95 = sbr.rel (0) target = $region49
    $region48: #{tpu_custom_call.1} parent=1 // pred_region
      %97 = dma.done [#allocation5], 16
    $region49: #{tpu_custom_call.1} parent=1 // pred_fallthru
      _
    %98 = sfence
    %v100 = vld [vmem:[#allocation2] sm:$0xff]
    %v101 = vpack.c.bf16 %v100, %v100
    %v102 = vld [vmem:[#allocation6] sm:$0xff]
    %v103 = vld [vmem:[#allocation6 + $0x8] sm:$0xff]
    %v104 = vld [vmem:[#allocation6 + $0x10] sm:$0xff]
    %v105 = vld [vmem:[#allocation6 + $0x18] sm:$0xff]
    %v106 = vld [vmem:[#allocation8] sm:$0x3]
    %v108 = vperm.slane %v106, 0
    %v109 = vperm.slane %v106, 1
    %v116 = vunpack.c.l.b16 %v102
    %v117 = vunpack.c.h.b16 %v102
    %v118 = vunpack.c.l.b16 %v103
    %v119 = vunpack.c.h.b16 %v103
    %v120 = vunpack.c.l.b16 %v104
    %v121 = vunpack.c.h.b16 %v104
    %v122 = vunpack.c.l.b16 %v105
    %v123 = vunpack.c.h.b16 %v105
    %v124 = vpack.c.b16 %v118, %v116
    %v125 = vpack.c.b16 %v119, %v117
    %v126 = vpack.c.b16 %v122, %v120
    %v127 = vpack.c.b16 %v123, %v121
    %vm132 = vcmask 261120
    %v134 = vsel %vm132, %v101, 0
    %136 = vmatpush.bf16.msra.mxu0 0
    %137 = vmatpush.bf16.msra.mxu0 0
    %138 = vmatpush.bf16.msra.mxu0 0
    %139 = vmatpush.bf16.msra.mxu0 0
    %140 = vmatpush.bf16.msra.mxu0 0
    %141 = vmatpush.bf16.msra.mxu0 0
    %142 = vmatpush.bf16.msra.mxu0 %v126
    %143 = vmatpush.bf16.msra.mxu0 %v124
    %144 = vmatmul.bf16.gmra.mxu0 %v134
    %v145 = vpop.f32.mrf.mxu0
    %v146 = vadd.f32 %v108, %v145
    %v147 = vpop.f32.mrf.mxu0
    %148 = vdwg.mxu0
    %149 = vmatpush.bf16.msra.mxu0 0
    %150 = vmatpush.bf16.msra.mxu0 0
    %151 = vmatpush.bf16.msra.mxu0 0
    %152 = vmatpush.bf16.msra.mxu0 0
    %153 = vmatpush.bf16.msra.mxu0 0
    %154 = vmatpush.bf16.msra.mxu0 0
    %155 = vmatpush.bf16.msra.mxu0 %v127
    %156 = vmatpush.bf16.msra.mxu0 %v125
    %157 = vmatmul.bf16.gmra.mxu0 %v134
    %v158 = vpop.f32.mrf.mxu0
    %v159 = vadd.f32 %v109, %v158
    %v160 = vpop.f32.mrf.mxu0
    %161 = vdwg.mxu0
    %v162 = vmul.f32 %v146, 0.01
    %v163 = vmul.f32 %v159, 0.01
    %v164 = vmax.f32 %v146, %v162
    %v165 = vmax.f32 %v159, %v163
    %v166 = vpack.c.bf16 %v165, %v164
    %v167 = vld [vmem:[#allocation9] sm:$0xf]
    %v168 = vld [vmem:[#allocation9 + $0x4] sm:$0xf]
    %v169 = vld [vmem:[#allocation9 + $0x8] sm:$0xf]
    %v170 = vld [vmem:[#allocation9 + $0xc] sm:$0xf]
    %v171 = vld [vmem:[#allocation9 + $0x10] sm:$0xf]
    %v172 = vld [vmem:[#allocation9 + $0x14] sm:$0xf]
    %v173 = vld [vmem:[#allocation9 + $0x18] sm:$0xf]
    %v174 = vld [vmem:[#allocation9 + $0x1c] sm:$0xf]
    %v175 = vld [vmem:[#allocation9 + $0x20] sm:$0xf]
    %v176 = vld [vmem:[#allocation9 + $0x24] sm:$0xf]
    %v177 = vld [vmem:[#allocation9 + $0x28] sm:$0xf]
    %v178 = vld [vmem:[#allocation9 + $0x2c] sm:$0xf]
    %v179 = vld [vmem:[#allocation9 + $0x30] sm:$0xf]
    %v180 = vld [vmem:[#allocation9 + $0x34] sm:$0xf]
    %v181 = vld [vmem:[#allocation9 + $0x38] sm:$0xf]
    %v182 = vld [vmem:[#allocation9 + $0x3c] sm:$0xf]
    %v183 = vld [vmem:[%s4] sm:$0x1]
    %v185 = vperm.slane %v183, 0
    %v203 = vunpack.c.l.b16 %v167
    %v204 = vunpack.c.l.b16 %v168
    %v205 = vunpack.c.l.b16 %v169
    %v206 = vunpack.c.l.b16 %v170
    %v207 = vunpack.c.l.b16 %v171
    %v208 = vunpack.c.l.b16 %v172
    %v209 = vunpack.c.l.b16 %v173
    %v210 = vunpack.c.l.b16 %v174
    %v211 = vunpack.c.l.b16 %v175
    %v212 = vunpack.c.l.b16 %v176
    %v213 = vunpack.c.l.b16 %v177
    %v214 = vunpack.c.l.b16 %v178
    %v215 = vunpack.c.l.b16 %v179
    %v216 = vunpack.c.l.b16 %v180
    %v217 = vunpack.c.l.b16 %v181
    %v218 = vunpack.c.l.b16 %v182
    %v219 = vpack.c.b16 %v204, %v203
    %v220 = vpack.c.b16 %v206, %v205
    %v221 = vpack.c.b16 %v208, %v207
    %v222 = vpack.c.b16 %v210, %v209
    %v223 = vpack.c.b16 %v212, %v211
    %v224 = vpack.c.b16 %v214, %v213
    %v225 = vpack.c.b16 %v216, %v215
    %v226 = vpack.c.b16 %v218, %v217
    %235 = vmatpush.bf16.msra.mxu0 %v226
    %236 = vmatpush.bf16.msra.mxu0 %v225
    %237 = vmatpush.bf16.msra.mxu0 %v224
    %238 = vmatpush.bf16.msra.mxu0 %v223
    %239 = vmatpush.bf16.msra.mxu0 %v222
    %240 = vmatpush.bf16.msra.mxu0 %v221
    %241 = vmatpush.bf16.msra.mxu0 %v220
    %242 = vmatpush.bf16.msra.mxu0 %v219
    %243 = vmatmul.bf16.gmra.mxu0 %v166
    %v244 = vpop.f32.mrf.mxu0
    %v245 = vadd.f32 %v185, %v244
    %v246 = vpop.f32.mrf.mxu0
    %247 = vdwg.mxu0
    %v248 = vmul.f32 %v245, 0.01
    %v249 = vmax.f32 %v245, %v248
    %v250 = vld [vmem:[%s5] sm:$0x1]
    %v252 = vperm.slane %v250, 0
    %v254 = vmul.f32 %v249, %v252
    %255 = vadd.xlane.f32.xlu0 %v254
    %v256 = vpop.xlane.xlu0 %255
    %s257 = sld [smem:[#allocation11]]
    %v258 = vstv %s257
    %v259 = vadd.f32 %v256, %v258
    %s260 = scalar_lea.vmem [#allocation9], 64
    %v261 = vld [vmem:[%s260] sm:$0xf]
    %v262 = vld [vmem:[%s260 + $0x4] sm:$0xf]
    %v263 = vld [vmem:[%s260 + $0x8] sm:$0xf]
    %v264 = vld [vmem:[%s260 + $0xc] sm:$0xf]
    %v265 = vld [vmem:[%s260 + $0x10] sm:$0xf]
    %v266 = vld [vmem:[%s260 + $0x14] sm:$0xf]
    %v267 = vld [vmem:[%s260 + $0x18] sm:$0xf]
    %v268 = vld [vmem:[%s260 + $0x1c] sm:$0xf]
    %v269 = vld [vmem:[%s260 + $0x20] sm:$0xf]
    %v270 = vld [vmem:[%s260 + $0x24] sm:$0xf]
    %v271 = vld [vmem:[%s260 + $0x28] sm:$0xf]
    %v272 = vld [vmem:[%s260 + $0x2c] sm:$0xf]
    %v273 = vld [vmem:[%s260 + $0x30] sm:$0xf]
    %v274 = vld [vmem:[%s260 + $0x34] sm:$0xf]
    %v275 = vld [vmem:[%s260 + $0x38] sm:$0xf]
    %v276 = vld [vmem:[%s260 + $0x3c] sm:$0xf]
    %s277 = scalar_lea.vmem %s4, 1
    %v278 = vld [vmem:[%s277] sm:$0x1]
    %v280 = vperm.slane %v278, 0
    %v283 = vunpack.c.h.b16 %v166
    %v284 = vpack.c.b16 %v283, %v283
    %v302 = vunpack.c.l.b16 %v261
    %v303 = vunpack.c.l.b16 %v262
    %v304 = vunpack.c.l.b16 %v263
    %v305 = vunpack.c.l.b16 %v264
    %v306 = vunpack.c.l.b16 %v265
    %v307 = vunpack.c.l.b16 %v266
    %v308 = vunpack.c.l.b16 %v267
    %v309 = vunpack.c.l.b16 %v268
    %v310 = vunpack.c.l.b16 %v269
    %v311 = vunpack.c.l.b16 %v270
    %v312 = vunpack.c.l.b16 %v271
    %v313 = vunpack.c.l.b16 %v272
    %v314 = vunpack.c.l.b16 %v273
    %v315 = vunpack.c.l.b16 %v274
    %v316 = vunpack.c.l.b16 %v275
    %v317 = vunpack.c.l.b16 %v276
    %v318 = vpack.c.b16 %v303, %v302
    %v319 = vpack.c.b16 %v305, %v304
    %v320 = vpack.c.b16 %v307, %v306
    %v321 = vpack.c.b16 %v309, %v308
    %v322 = vpack.c.b16 %v311, %v310
    %v323 = vpack.c.b16 %v313, %v312
    %v324 = vpack.c.b16 %v315, %v314
    %v325 = vpack.c.b16 %v317, %v316
    %334 = vmatpush.bf16.msra.mxu0 %v325
    %335 = vmatpush.bf16.msra.mxu0 %v324
    %336 = vmatpush.bf16.msra.mxu0 %v323
    %337 = vmatpush.bf16.msra.mxu0 %v322
    %338 = vmatpush.bf16.msra.mxu0 %v321
    %339 = vmatpush.bf16.msra.mxu0 %v320
    %340 = vmatpush.bf16.msra.mxu0 %v319
    %341 = vmatpush.bf16.msra.mxu0 %v318
    %342 = vmatmul.bf16.gmra.mxu0 %v284
    %v343 = vpop.f32.mrf.mxu0
    %v344 = vadd.f32 %v280, %v343
    %v345 = vpop.f32.mrf.mxu0
    %346 = vdwg.mxu0
    %v347 = vmul.f32 %v344, 0.01
    %v348 = vmax.f32 %v344, %v347
    %s349 = scalar_lea.vmem %s5, 1
    %v350 = vld [vmem:[%s349] sm:$0x1]
    %v352 = vperm.slane %v350, 0
    %v354 = vmul.f32 %v348, %v352
    %355 = vadd.xlane.f32.xlu0 %v354
    %v356 = vpop.xlane.xlu0 %355
    %s357 = sld [smem:[#allocation11 + $0x1]]
    %v358 = vstv %s357
    %v359 = vadd.f32 %v356, %v358
    %vm360 = vcmask 7168
    %v361 = vsel %vm360, %v259, %v359
    %362 = vxpose.xlu0.b32.start [1/16] %v361, 128
    %363 = vxpose.xlu0.b32.cont [2/16] 0.0, 128
    %364 = vxpose.xlu0.b32.cont [3/16] 0.0, 128
    %365 = vxpose.xlu0.b32.cont [4/16] 0.0, 128
    %366 = vxpose.xlu0.b32.cont [5/16] 0.0, 128
    %367 = vxpose.xlu0.b32.cont [6/16] 0.0, 128
    %368 = vxpose.xlu0.b32.cont [7/16] 0.0, 128
    %369 = vxpose.xlu0.b32.cont [8/16] 0.0, 128
    %370 = vxpose.xlu0.b32.cont [9/16] 0.0, 128
    %371 = vxpose.xlu0.b32.cont [10/16] 0.0, 128
    %372 = vxpose.xlu0.b32.cont [11/16] 0.0, 128
    %373 = vxpose.xlu0.b32.cont [12/16] 0.0, 128
    %374 = vxpose.xlu0.b32.cont [13/16] 0.0, 128
    %375 = vxpose.xlu0.b32.cont [14/16] 0.0, 128
    %376 = vxpose.xlu0.b32.cont [15/16] 0.0, 128
    %377 = vxpose.xlu0.b32.end [16/16] 0.0, 128
    %v378 = vpop.trf.xlu0
    %v379 = vpop.trf.xlu0
    %v380 = vpop.trf.xlu0
    %v381 = vpop.trf.xlu0
    %v382 = vpop.trf.xlu0
    %v383 = vpop.trf.xlu0
    %v384 = vpop.trf.xlu0
    %v385 = vpop.trf.xlu0
    %v386 = vpop.trf.xlu0
    %v387 = vpop.trf.xlu0
    %v388 = vpop.trf.xlu0
    %v389 = vpop.trf.xlu0
    %v390 = vpop.trf.xlu0
    %v391 = vpop.trf.xlu0
    %v392 = vpop.trf.xlu0
    %v393 = vpop.trf.xlu0
    %vm394 = vcmask 58368
    %395 = vst.msk [vmem:[#allocation12] sm:$0x3] %vm394, %v378
    // Predicated region
    $region50: #{tpu_custom_call.1} parent=1 // pred_check
      _
    $region51: #{tpu_custom_call.1} parent=1 // pred_check_branch
      %397 = sbr.rel (0) target = $region53
    $region52: #{tpu_custom_call.1} parent=1 // pred_region
      %399 = vsyncadd [#allocation4], 0
      %s401 = sshll.u32 [#allocation12], 4
      %s402 = int_to_ptr.vmem [resolvable:$true] %s401
      %s403 = sshll.u32 %s7, 4
      %s404 = int_to_ptr.hbm [resolvable:$true] %s403
      %406 = dma.vmem_to_hbm [thread:$0]  %s402, 32, %s404, [#allocation4]
    $region53: #{tpu_custom_call.1} parent=1 // pred_fallthru
      _
    // Predicated region
    $region54: #{tpu_custom_call.1} parent=1 // pred_check
      _
    $region55: #{tpu_custom_call.1} parent=1 // pred_check_branch
      %408 = sbr.rel (0) target = $region57
    $region56: #{tpu_custom_call.1} parent=1 // pred_region
      %410 = dma.done [#allocation4], 32
    $region57: #{tpu_custom_call.1} parent=1 // pred_fallthru
      _
    %411 = vsyncpa [#allocation3], 1
    %412 = vsyncpa [#allocation7], 1
    %413 = vsyncpa [#allocation10], 1
    %414 = vsyncpa [#allocation4], 1
    %415 = vsyncpa [#allocation5], 1

</llo_original>
